<compile_context>
chip_gen: v7x
topology: tpu7x:2x2x1
jax: 0.10.0
libtpu: 0.0.40
codegen_flags: <defaults>
</compile_context>

<pallas_src>
import jax
import jax.numpy as jnp
from jax.experimental import pallas as pl
from jax.experimental.pallas import tpu as pltpu


def _make_kernel(C, F, H, W, compute_dtype):
    HW = H * W
    assert C == F, "residual add requires in_ch == filters"
    offsets = [(oh, ow) for oh in (-1, 0, 1) for ow in (-1, 0, 1)]

    def kernel(x_ref, w1_ref, w2_ref, o_ref, im_ref):
        # x_ref : (C, H*W)       f32 activations of ONE batch element (lane-dense)
        # w1_ref: (F, 9*C + 2)   conv1 weights, BN1 scale folded, cols[-2:]=[bias,0]
        # w2_ref: (F, 9*F + 2)   conv2 weights, BN2 scale folded, cols[-2:]=[bias,0]
        # o_ref : (F, H*W)       f32 output
        # im_ref: (9*C + 2, H*W) compute_dtype im2col staging scratch
        x = x_ref[...]

        # ---- boundary masks: data-independent, computed ONCE, reused twice ----
        hw = jax.lax.broadcasted_iota(jnp.int32, (C, HW), 1)
        if (W & (W - 1)) == 0:                       # power-of-two width
            h_idx = hw >> (W.bit_length() - 1)
            w_idx = hw & (W - 1)
        else:                                        # general fallback
            h_idx = hw // W
            w_idx = hw % W
        masks = []
        for oh, ow in offsets:
            m = None
            for cond in (
                (h_idx >= -oh) if oh < 0 else None,      # h + oh >= 0
                (h_idx < H - oh) if oh > 0 else None,    # h + oh <  H
                (w_idx >= -ow) if ow < 0 else None,      # w + ow >= 0
                (w_idx < W - ow) if ow > 0 else None,    # w + ow <  W
            ):
                if cond is not None:
                    m = cond if m is None else (m & cond)
            masks.append(m)                          # None for the centre tap

        # Constant ones-rows -> BN bias is folded into the matmul accumulate.
        # (Two rows so every scratch store stays packed-sublane aligned.)
        im_ref[pl.ds(9 * C, 2), :] = jnp.ones((2, HW), compute_dtype)

        def stage_im2col(a):
            """Store the 9 shifted + masked taps of `a` into the scratch rows."""
            for t, (oh, ow) in enumerate(offsets):
                s = oh * W + ow                      # flattened tap offset
                tap = a if s == 0 else pltpu.roll(a, shift=(-s) % HW, axis=1)
                if masks[t] is not None:
                    tap = jnp.where(masks[t], tap, 0.0)
                im_ref[pl.ds(t * C, C), :] = tap.astype(compute_dtype)

        # conv1 + BN1 (+bias) + ReLU  -- one MXU matmul.
        stage_im2col(x)
        y1 = jnp.dot(w1_ref[...], im_ref[...],
                     preferred_element_type=jnp.float32)
        y1 = jnp.maximum(y1, 0.0)

        # conv2 + BN2 (+bias) + residual + ReLU -- one MXU matmul.
        stage_im2col(y1)
        y2 = jnp.dot(w2_ref[...], im_ref[...],
                     preferred_element_type=jnp.float32)
        o_ref[...] = jnp.maximum(y2 + x, 0.0).astype(o_ref.dtype)

    return kernel


def _fold_weights(w_hwio, scale, bias, dtype):
    """(3,3,Cin,F) HWIO conv weights -> (F, 9*Cin+2) matrix matching the
    in-kernel im2col row order (tap-major, channel-minor).  The BN scale is
    folded into the weights; column 9*Cin holds the BN bias and column
    9*Cin+1 is zero (pairs with the second ones-row for aligned stores)."""
    kh, kw, cin, f = w_hwio.shape
    ws = (w_hwio * scale.reshape(1, 1, 1, f)).reshape(kh * kw * cin, f)
    extra = jnp.stack([bias, jnp.zeros_like(bias)], axis=0)         # (2, F)
    return jnp.concatenate([ws, extra], axis=0).T.astype(dtype)     # (F, 9*cin+2)


def residual_block(x_nchw, params, compute_dtype=jnp.bfloat16):
    """AlphaZero residual block.  x_nchw: (N, C, H, W) float32 (PyTorch layout)."""
    w1, s1, b1, w2, s2, b2 = params
    N, C, H, W = x_nchw.shape
    F = w1.shape[3]
    assert C == F, "residual add requires in_ch == filters"
    HW = H * W
    K1, K2 = 9 * C + 2, 9 * F + 2

    x3d = x_nchw.reshape(N, C, HW).astype(jnp.float32)      # pure reshape
    wm1 = _fold_weights(w1, s1, b1, compute_dtype)          # (F, 9*C+2), resident
    wm2 = _fold_weights(w2, s2, b2, compute_dtype)          # (F, 9*F+2), resident

    # Advisory scheduling hint + explicit (generous) VMEM budget.
    itemsize = jnp.dtype(compute_dtype).itemsize
    flops = 2 * N * HW * (F * K1 + F * K2)
    bytes_accessed = (x3d.size + N * F * HW) * 4 + (wm1.size + wm2.size) * itemsize
    block_bytes = (2 * (C + F) * HW * 4                     # double-buffered x / out
                   + (wm1.size + wm2.size) * itemsize       # resident weights
                   + K1 * HW * itemsize)                    # im2col scratch
    vmem_limit = int(min(max(4 * block_bytes, 4 << 20), 32 << 20))

    out3d = pl.pallas_call(
        _make_kernel(C, F, H, W, compute_dtype),
        out_shape=jax.ShapeDtypeStruct((N, F, HW), jnp.float32),
        grid=(N,),                          # batch grid: pipelined, v7x-splittable
        in_specs=[
            pl.BlockSpec((None, C, HW), lambda b: (b, 0, 0)),   # per-batch slab
            pl.BlockSpec((F, K1), lambda b: (0, 0)),            # resident weights
            pl.BlockSpec((F, K2), lambda b: (0, 0)),
        ],
        out_specs=pl.BlockSpec((None, F, HW), lambda b: (b, 0, 0)),
        scratch_shapes=[pltpu.VMEM((K1, HW), compute_dtype)],   # im2col staging
        compiler_params=pltpu.CompilerParams(
            dimension_semantics=("parallel",),
            vmem_limit_bytes=vmem_limit),
        cost_estimate=pl.CostEstimate(
            flops=flops, transcendentals=0, bytes_accessed=bytes_accessed),
    )(x3d, wm1, wm2)

    return out3d.reshape(N, F, H, W)                        # back to NCHW


def make_params(key, in_ch, filters):
    """Deterministic synthetic parameters; BN folded to scale/bias (eval mode)."""
    k1, k2 = jax.random.split(key)
    w1 = jax.random.normal(k1, (3, 3, in_ch, filters), jnp.float32) * 0.1   # HWIO
    w2 = jax.random.normal(k2, (3, 3, filters, filters), jnp.float32) * 0.1
    f = jnp.arange(filters, dtype=jnp.float32)
    eps = 1e-5
    gamma1, beta1 = 1.0 + 0.10 * f, 0.01 * f
    mean1, var1 = 0.05 * f, 1.0 + 0.20 * f
    gamma2, beta2 = 1.0 - 0.05 * f, -0.02 * f
    mean2, var2 = -0.03 * f, 1.0 + 0.10 * f
    s1 = gamma1 / jnp.sqrt(var1 + eps)
    b1 = beta1 - mean1 * s1
    s2 = gamma2 / jnp.sqrt(var2 + eps)
    b2 = beta2 - mean2 * s2
    return w1, s1, b1, w2, s2, b2


def reference(x_nchw, params):
    """Pure-JAX reference (XLA convs) for correctness checking."""
    w1, s1, b1, w2, s2, b2 = params
    dn = ('NCHW', 'HWIO', 'NCHW')
    bn = lambda z, s, b: z * s.reshape(1, -1, 1, 1) + b.reshape(1, -1, 1, 1)
    y = jax.lax.conv_general_dilated(x_nchw, w1, (1, 1), 'SAME',
                                     dimension_numbers=dn,
                                     precision=jax.lax.Precision.HIGHEST)
    y = jnp.maximum(bn(y, s1, b1), 0.0)
    z = jax.lax.conv_general_dilated(y, w2, (1, 1), 'SAME',
                                     dimension_numbers=dn,
                                     precision=jax.lax.Precision.HIGHEST)
    z = jnp.maximum(bn(z, s2, b2) + x_nchw, 0.0)
    return z


if __name__ == "__main__":
    key = jax.random.PRNGKey(0)
    kx, kp = jax.random.split(key)

    N, C, H, W = 2, 4, 16, 16        # batch=2, in_ch=filters=4, spatial=16
    filters = 4

    x = jax.random.normal(kx, (N, C, H, W), jnp.float32)
    params = make_params(kp, C, filters)

    out = residual_block(x, params)
    jax.block_until_ready(out)

    ref = reference(x, params)
    assert out.shape == (N, filters, H, W)
    # bf16 MXU operands (f32 accumulate) vs the f32 HIGHEST-precision XLA
    # reference: observed error is a few 1e-3; 2e-2 gives headroom.
    if not jnp.allclose(out, ref, atol=2e-2, rtol=2e-2):
        raise AssertionError(
            f"mismatch, max abs err = {float(jnp.max(jnp.abs(out - ref)))}")
    print("KERNEL_OK")
</pallas_src>

<mosaic_0001>
module attributes {stable_mosaic.version = 11 : i64} {
  func.func @kernel(%arg0: i32, %arg1: memref<1x4x256xf32, #tpu.memory_space<vmem>>, %arg2: memref<4x38xbf16, #tpu.memory_space<vmem>>, %arg3: memref<4x38xbf16, #tpu.memory_space<vmem>>, %arg4: memref<1x4x256xf32, #tpu.memory_space<vmem>>, %arg5: memref<38x256xbf16, #tpu.memory_space<vmem>>) attributes {dimension_semantics = [#tpu.dimension_semantics<parallel>], iteration_bounds = array<i64: 2>, scalar_prefetch = 0 : i64, scratch_operands = 1 : i64, tpu.core_type = #tpu.core_type<tc>, window_params = [{transform_indices = @transform_0, window_bounds = array<i64: 1, 4, 256>}, {pipeline_mode = #tpu.pipeline_mode<synchronous>, transform_indices = @transform_1, window_bounds = array<i64: 4, 38>}, {pipeline_mode = #tpu.pipeline_mode<synchronous>, transform_indices = @transform_2, window_bounds = array<i64: 4, 38>}, {transform_indices = @transform_3, window_bounds = array<i64: 1, 4, 256>}]} {
    %c0 = arith.constant 0 : index
    %c0_0 = arith.constant 0 : index
    %c0_1 = arith.constant 0 : index
    %0 = vector.load %arg1[%c0, %c0_0, %c0_1] : memref<1x4x256xf32, #tpu.memory_space<vmem>>, vector<1x4x256xf32>
    %1 = vector.shape_cast %0 : vector<1x4x256xf32> to vector<4x256xf32>
    %2 = tpu.iota {dimensions = array<i32: 1>} : vector<4x256xi32>
    %c4_i32 = arith.constant 4 : i32
    %3 = vector.broadcast %c4_i32 : i32 to vector<4x256xi32>
    %4 = arith.shrsi %2, %3 : vector<4x256xi32>
    %c15_i32 = arith.constant 15 : i32
    %5 = vector.broadcast %c15_i32 : i32 to vector<4x256xi32>
    %6 = arith.andi %2, %5 : vector<4x256xi32>
    %c1_i32 = arith.constant 1 : i32
    %7 = vector.broadcast %c1_i32 : i32 to vector<4x256xi32>
    %8 = arith.cmpi sge, %4, %7 : vector<4x256xi32>
    %c1_i32_2 = arith.constant 1 : i32
    %9 = vector.broadcast %c1_i32_2 : i32 to vector<4x256xi32>
    %10 = arith.cmpi sge, %6, %9 : vector<4x256xi32>
    %11 = arith.andi %8, %10 : vector<4x256xi1>
    %c1_i32_3 = arith.constant 1 : i32
    %12 = vector.broadcast %c1_i32_3 : i32 to vector<4x256xi32>
    %13 = arith.cmpi sge, %4, %12 : vector<4x256xi32>
    %c1_i32_4 = arith.constant 1 : i32
    %14 = vector.broadcast %c1_i32_4 : i32 to vector<4x256xi32>
    %15 = arith.cmpi sge, %4, %14 : vector<4x256xi32>
    %c15_i32_5 = arith.constant 15 : i32
    %16 = vector.broadcast %c15_i32_5 : i32 to vector<4x256xi32>
    %17 = arith.cmpi slt, %6, %16 : vector<4x256xi32>
    %18 = arith.andi %15, %17 : vector<4x256xi1>
    %c1_i32_6 = arith.constant 1 : i32
    %19 = vector.broadcast %c1_i32_6 : i32 to vector<4x256xi32>
    %20 = arith.cmpi sge, %6, %19 : vector<4x256xi32>
    %c15_i32_7 = arith.constant 15 : i32
    %21 = vector.broadcast %c15_i32_7 : i32 to vector<4x256xi32>
    %22 = arith.cmpi slt, %6, %21 : vector<4x256xi32>
    %c15_i32_8 = arith.constant 15 : i32
    %23 = vector.broadcast %c15_i32_8 : i32 to vector<4x256xi32>
    %24 = arith.cmpi slt, %4, %23 : vector<4x256xi32>
    %c1_i32_9 = arith.constant 1 : i32
    %25 = vector.broadcast %c1_i32_9 : i32 to vector<4x256xi32>
    %26 = arith.cmpi sge, %6, %25 : vector<4x256xi32>
    %27 = arith.andi %24, %26 : vector<4x256xi1>
    %c15_i32_10 = arith.constant 15 : i32
    %28 = vector.broadcast %c15_i32_10 : i32 to vector<4x256xi32>
    %29 = arith.cmpi slt, %4, %28 : vector<4x256xi32>
    %c15_i32_11 = arith.constant 15 : i32
    %30 = vector.broadcast %c15_i32_11 : i32 to vector<4x256xi32>
    %31 = arith.cmpi slt, %4, %30 : vector<4x256xi32>
    %c15_i32_12 = arith.constant 15 : i32
    %32 = vector.broadcast %c15_i32_12 : i32 to vector<4x256xi32>
    %33 = arith.cmpi slt, %6, %32 : vector<4x256xi32>
    %34 = arith.andi %31, %33 : vector<4x256xi1>
    %cst = arith.constant 1.000000e+00 : bf16
    %35 = vector.broadcast %cst : bf16 to vector<2x256xbf16>
    %c36 = arith.constant 36 : index
    %c0_13 = arith.constant 0 : index
    %36 = vector.load %arg5[%c36, %c0_13] : memref<38x256xbf16, #tpu.memory_space<vmem>>, vector<2x256xbf16>
    tpu.vector_store %arg5[%c36, %c0_13], %35 {strides = array<i32>} : memref<38x256xbf16, #tpu.memory_space<vmem>>, vector<2x256xbf16>,
    %c17_i32 = arith.constant 17 : i32
    %37 = tpu.dynamic_rotate %1 by %c17_i32 dim 1 : vector<4x256xf32>, i32 -> vector<4x256xf32>
    %cst_14 = arith.constant 0.000000e+00 : f32
    %38 = vector.broadcast %cst_14 : f32 to vector<4x256xf32>
    %39 = arith.select %11, %37, %38 : vector<4x256xi1>, vector<4x256xf32>
    %40 = arith.truncf %39 : vector<4x256xf32> to vector<4x256xbf16>
    %c0_15 = arith.constant 0 : index
    %c0_16 = arith.constant 0 : index
    %41 = vector.load %arg5[%c0_15, %c0_16] : memref<38x256xbf16, #tpu.memory_space<vmem>>, vector<4x256xbf16>
    tpu.vector_store %arg5[%c0_15, %c0_16], %40 {strides = array<i32>} : memref<38x256xbf16, #tpu.memory_space<vmem>>, vector<4x256xbf16>,
    %c16_i32 = arith.constant 16 : i32
    %42 = tpu.dynamic_rotate %1 by %c16_i32 dim 1 : vector<4x256xf32>, i32 -> vector<4x256xf32>
    %cst_17 = arith.constant 0.000000e+00 : f32
    %43 = vector.broadcast %cst_17 : f32 to vector<4x256xf32>
    %44 = arith.select %13, %42, %43 : vector<4x256xi1>, vector<4x256xf32>
    %45 = arith.truncf %44 : vector<4x256xf32> to vector<4x256xbf16>
    %c4 = arith.constant 4 : index
    %c0_18 = arith.constant 0 : index
    %46 = vector.load %arg5[%c4, %c0_18] : memref<38x256xbf16, #tpu.memory_space<vmem>>, vector<4x256xbf16>
    tpu.vector_store %arg5[%c4, %c0_18], %45 {strides = array<i32>} : memref<38x256xbf16, #tpu.memory_space<vmem>>, vector<4x256xbf16>,
    %c15_i32_19 = arith.constant 15 : i32
    %47 = tpu.dynamic_rotate %1 by %c15_i32_19 dim 1 : vector<4x256xf32>, i32 -> vector<4x256xf32>
    %cst_20 = arith.constant 0.000000e+00 : f32
    %48 = vector.broadcast %cst_20 : f32 to vector<4x256xf32>
    %49 = arith.select %18, %47, %48 : vector<4x256xi1>, vector<4x256xf32>
    %50 = arith.truncf %49 : vector<4x256xf32> to vector<4x256xbf16>
    %c8 = arith.constant 8 : index
    %c0_21 = arith.constant 0 : index
    %51 = vector.load %arg5[%c8, %c0_21] : memref<38x256xbf16, #tpu.memory_space<vmem>>, vector<4x256xbf16>
    tpu.vector_store %arg5[%c8, %c0_21], %50 {strides = array<i32>} : memref<38x256xbf16, #tpu.memory_space<vmem>>, vector<4x256xbf16>,
    %c1_i32_22 = arith.constant 1 : i32
    %52 = tpu.dynamic_rotate %1 by %c1_i32_22 dim 1 : vector<4x256xf32>, i32 -> vector<4x256xf32>
    %cst_23 = arith.constant 0.000000e+00 : f32
    %53 = vector.broadcast %cst_23 : f32 to vector<4x256xf32>
    %54 = arith.select %20, %52, %53 : vector<4x256xi1>, vector<4x256xf32>
    %55 = arith.truncf %54 : vector<4x256xf32> to vector<4x256xbf16>
    %c12 = arith.constant 12 : index
    %c0_24 = arith.constant 0 : index
    %56 = vector.load %arg5[%c12, %c0_24] : memref<38x256xbf16, #tpu.memory_space<vmem>>, vector<4x256xbf16>
    tpu.vector_store %arg5[%c12, %c0_24], %55 {strides = array<i32>} : memref<38x256xbf16, #tpu.memory_space<vmem>>, vector<4x256xbf16>,
    %57 = arith.truncf %1 : vector<4x256xf32> to vector<4x256xbf16>
    %c16 = arith.constant 16 : index
    %c0_25 = arith.constant 0 : index
    %58 = vector.load %arg5[%c16, %c0_25] : memref<38x256xbf16, #tpu.memory_space<vmem>>, vector<4x256xbf16>
    tpu.vector_store %arg5[%c16, %c0_25], %57 {strides = array<i32>} : memref<38x256xbf16, #tpu.memory_space<vmem>>, vector<4x256xbf16>,
    %c255_i32 = arith.constant 255 : i32
    %59 = tpu.dynamic_rotate %1 by %c255_i32 dim 1 : vector<4x256xf32>, i32 -> vector<4x256xf32>
    %cst_26 = arith.constant 0.000000e+00 : f32
    %60 = vector.broadcast %cst_26 : f32 to vector<4x256xf32>
    %61 = arith.select %22, %59, %60 : vector<4x256xi1>, vector<4x256xf32>
    %62 = arith.truncf %61 : vector<4x256xf32> to vector<4x256xbf16>
    %c20 = arith.constant 20 : index
    %c0_27 = arith.constant 0 : index
    %63 = vector.load %arg5[%c20, %c0_27] : memref<38x256xbf16, #tpu.memory_space<vmem>>, vector<4x256xbf16>
    tpu.vector_store %arg5[%c20, %c0_27], %62 {strides = array<i32>} : memref<38x256xbf16, #tpu.memory_space<vmem>>, vector<4x256xbf16>,
    %c241_i32 = arith.constant 241 : i32
    %64 = tpu.dynamic_rotate %1 by %c241_i32 dim 1 : vector<4x256xf32>, i32 -> vector<4x256xf32>
    %cst_28 = arith.constant 0.000000e+00 : f32
    %65 = vector.broadcast %cst_28 : f32 to vector<4x256xf32>
    %66 = arith.select %27, %64, %65 : vector<4x256xi1>, vector<4x256xf32>
    %67 = arith.truncf %66 : vector<4x256xf32> to vector<4x256xbf16>
    %c24 = arith.constant 24 : index
    %c0_29 = arith.constant 0 : index
    %68 = vector.load %arg5[%c24, %c0_29] : memref<38x256xbf16, #tpu.memory_space<vmem>>, vector<4x256xbf16>
    tpu.vector_store %arg5[%c24, %c0_29], %67 {strides = array<i32>} : memref<38x256xbf16, #tpu.memory_space<vmem>>, vector<4x256xbf16>,
    %c240_i32 = arith.constant 240 : i32
    %69 = tpu.dynamic_rotate %1 by %c240_i32 dim 1 : vector<4x256xf32>, i32 -> vector<4x256xf32>
    %cst_30 = arith.constant 0.000000e+00 : f32
    %70 = vector.broadcast %cst_30 : f32 to vector<4x256xf32>
    %71 = arith.select %29, %69, %70 : vector<4x256xi1>, vector<4x256xf32>
    %72 = arith.truncf %71 : vector<4x256xf32> to vector<4x256xbf16>
    %c28 = arith.constant 28 : index
    %c0_31 = arith.constant 0 : index
    %73 = vector.load %arg5[%c28, %c0_31] : memref<38x256xbf16, #tpu.memory_space<vmem>>, vector<4x256xbf16>
    tpu.vector_store %arg5[%c28, %c0_31], %72 {strides = array<i32>} : memref<38x256xbf16, #tpu.memory_space<vmem>>, vector<4x256xbf16>,
    %c239_i32 = arith.constant 239 : i32
    %74 = tpu.dynamic_rotate %1 by %c239_i32 dim 1 : vector<4x256xf32>, i32 -> vector<4x256xf32>
    %cst_32 = arith.constant 0.000000e+00 : f32
    %75 = vector.broadcast %cst_32 : f32 to vector<4x256xf32>
    %76 = arith.select %34, %74, %75 : vector<4x256xi1>, vector<4x256xf32>
    %77 = arith.truncf %76 : vector<4x256xf32> to vector<4x256xbf16>
    %c32 = arith.constant 32 : index
    %c0_33 = arith.constant 0 : index
    %78 = vector.load %arg5[%c32, %c0_33] : memref<38x256xbf16, #tpu.memory_space<vmem>>, vector<4x256xbf16>
    tpu.vector_store %arg5[%c32, %c0_33], %77 {strides = array<i32>} : memref<38x256xbf16, #tpu.memory_space<vmem>>, vector<4x256xbf16>,
    %c0_34 = arith.constant 0 : index
    %c0_35 = arith.constant 0 : index
    %79 = vector.load %arg2[%c0_34, %c0_35] : memref<4x38xbf16, #tpu.memory_space<vmem>>, vector<4x38xbf16>
    %c0_36 = arith.constant 0 : index
    %c0_37 = arith.constant 0 : index
    %80 = vector.load %arg5[%c0_36, %c0_37] : memref<38x256xbf16, #tpu.memory_space<vmem>>, vector<38x256xbf16>
    %cst_38 = arith.constant dense<0.000000e+00> : vector<4x256xf32>
    %81 = tpu.matmul %79, %80, %cst_38 {dimension_numbers = #tpu.dot_dimension_numbers<[1], [0], [0], [1], [0, 0, 1, 1], [], []>} : vector<4x38xbf16>, vector<38x256xbf16>, vector<4x256xf32> -> vector<4x256xf32>
    %cst_39 = arith.constant 0.000000e+00 : f32
    %82 = vector.broadcast %cst_39 : f32 to vector<4x256xf32>
    %83 = arith.maximumf %81, %82 : vector<4x256xf32>
    %c17_i32_40 = arith.constant 17 : i32
    %84 = tpu.dynamic_rotate %83 by %c17_i32_40 dim 1 : vector<4x256xf32>, i32 -> vector<4x256xf32>
    %cst_41 = arith.constant 0.000000e+00 : f32
    %85 = vector.broadcast %cst_41 : f32 to vector<4x256xf32>
    %86 = arith.select %11, %84, %85 : vector<4x256xi1>, vector<4x256xf32>
    %87 = arith.truncf %86 : vector<4x256xf32> to vector<4x256xbf16>
    %c0_42 = arith.constant 0 : index
    %c0_43 = arith.constant 0 : index
    %88 = vector.load %arg5[%c0_42, %c0_43] : memref<38x256xbf16, #tpu.memory_space<vmem>>, vector<4x256xbf16>
    tpu.vector_store %arg5[%c0_42, %c0_43], %87 {strides = array<i32>} : memref<38x256xbf16, #tpu.memory_space<vmem>>, vector<4x256xbf16>,
    %c16_i32_44 = arith.constant 16 : i32
    %89 = tpu.dynamic_rotate %83 by %c16_i32_44 dim 1 : vector<4x256xf32>, i32 -> vector<4x256xf32>
    %cst_45 = arith.constant 0.000000e+00 : f32
    %90 = vector.broadcast %cst_45 : f32 to vector<4x256xf32>
    %91 = arith.select %13, %89, %90 : vector<4x256xi1>, vector<4x256xf32>
    %92 = arith.truncf %91 : vector<4x256xf32> to vector<4x256xbf16>
    %c4_46 = arith.constant 4 : index
    %c0_47 = arith.constant 0 : index
    %93 = vector.load %arg5[%c4_46, %c0_47] : memref<38x256xbf16, #tpu.memory_space<vmem>>, vector<4x256xbf16>
    tpu.vector_store %arg5[%c4_46, %c0_47], %92 {strides = array<i32>} : memref<38x256xbf16, #tpu.memory_space<vmem>>, vector<4x256xbf16>,
    %c15_i32_48 = arith.constant 15 : i32
    %94 = tpu.dynamic_rotate %83 by %c15_i32_48 dim 1 : vector<4x256xf32>, i32 -> vector<4x256xf32>
    %cst_49 = arith.constant 0.000000e+00 : f32
    %95 = vector.broadcast %cst_49 : f32 to vector<4x256xf32>
    %96 = arith.select %18, %94, %95 : vector<4x256xi1>, vector<4x256xf32>
    %97 = arith.truncf %96 : vector<4x256xf32> to vector<4x256xbf16>
    %c8_50 = arith.constant 8 : index
    %c0_51 = arith.constant 0 : index
    %98 = vector.load %arg5[%c8_50, %c0_51] : memref<38x256xbf16, #tpu.memory_space<vmem>>, vector<4x256xbf16>
    tpu.vector_store %arg5[%c8_50, %c0_51], %97 {strides = array<i32>} : memref<38x256xbf16, #tpu.memory_space<vmem>>, vector<4x256xbf16>,
    %c1_i32_52 = arith.constant 1 : i32
    %99 = tpu.dynamic_rotate %83 by %c1_i32_52 dim 1 : vector<4x256xf32>, i32 -> vector<4x256xf32>
    %cst_53 = arith.constant 0.000000e+00 : f32
    %100 = vector.broadcast %cst_53 : f32 to vector<4x256xf32>
    %101 = arith.select %20, %99, %100 : vector<4x256xi1>, vector<4x256xf32>
    %102 = arith.truncf %101 : vector<4x256xf32> to vector<4x256xbf16>
    %c12_54 = arith.constant 12 : index
    %c0_55 = arith.constant 0 : index
    %103 = vector.load %arg5[%c12_54, %c0_55] : memref<38x256xbf16, #tpu.memory_space<vmem>>, vector<4x256xbf16>
    tpu.vector_store %arg5[%c12_54, %c0_55], %102 {strides = array<i32>} : memref<38x256xbf16, #tpu.memory_space<vmem>>, vector<4x256xbf16>,
    %104 = arith.truncf %83 : vector<4x256xf32> to vector<4x256xbf16>
    %c16_56 = arith.constant 16 : index
    %c0_57 = arith.constant 0 : index
    %105 = vector.load %arg5[%c16_56, %c0_57] : memref<38x256xbf16, #tpu.memory_space<vmem>>, vector<4x256xbf16>
    tpu.vector_store %arg5[%c16_56, %c0_57], %104 {strides = array<i32>} : memref<38x256xbf16, #tpu.memory_space<vmem>>, vector<4x256xbf16>,
    %c255_i32_58 = arith.constant 255 : i32
    %106 = tpu.dynamic_rotate %83 by %c255_i32_58 dim 1 : vector<4x256xf32>, i32 -> vector<4x256xf32>
    %cst_59 = arith.constant 0.000000e+00 : f32
    %107 = vector.broadcast %cst_59 : f32 to vector<4x256xf32>
    %108 = arith.select %22, %106, %107 : vector<4x256xi1>, vector<4x256xf32>
    %109 = arith.truncf %108 : vector<4x256xf32> to vector<4x256xbf16>
    %c20_60 = arith.constant 20 : index
    %c0_61 = arith.constant 0 : index
    %110 = vector.load %arg5[%c20_60, %c0_61] : memref<38x256xbf16, #tpu.memory_space<vmem>>, vector<4x256xbf16>
    tpu.vector_store %arg5[%c20_60, %c0_61], %109 {strides = array<i32>} : memref<38x256xbf16, #tpu.memory_space<vmem>>, vector<4x256xbf16>,
    %c241_i32_62 = arith.constant 241 : i32
    %111 = tpu.dynamic_rotate %83 by %c241_i32_62 dim 1 : vector<4x256xf32>, i32 -> vector<4x256xf32>
    %cst_63 = arith.constant 0.000000e+00 : f32
    %112 = vector.broadcast %cst_63 : f32 to vector<4x256xf32>
    %113 = arith.select %27, %111, %112 : vector<4x256xi1>, vector<4x256xf32>
    %114 = arith.truncf %113 : vector<4x256xf32> to vector<4x256xbf16>
    %c24_64 = arith.constant 24 : index
    %c0_65 = arith.constant 0 : index
    %115 = vector.load %arg5[%c24_64, %c0_65] : memref<38x256xbf16, #tpu.memory_space<vmem>>, vector<4x256xbf16>
    tpu.vector_store %arg5[%c24_64, %c0_65], %114 {strides = array<i32>} : memref<38x256xbf16, #tpu.memory_space<vmem>>, vector<4x256xbf16>,
    %c240_i32_66 = arith.constant 240 : i32
    %116 = tpu.dynamic_rotate %83 by %c240_i32_66 dim 1 : vector<4x256xf32>, i32 -> vector<4x256xf32>
    %cst_67 = arith.constant 0.000000e+00 : f32
    %117 = vector.broadcast %cst_67 : f32 to vector<4x256xf32>
    %118 = arith.select %29, %116, %117 : vector<4x256xi1>, vector<4x256xf32>
    %119 = arith.truncf %118 : vector<4x256xf32> to vector<4x256xbf16>
    %c28_68 = arith.constant 28 : index
    %c0_69 = arith.constant 0 : index
    %120 = vector.load %arg5[%c28_68, %c0_69] : memref<38x256xbf16, #tpu.memory_space<vmem>>, vector<4x256xbf16>
    tpu.vector_store %arg5[%c28_68, %c0_69], %119 {strides = array<i32>} : memref<38x256xbf16, #tpu.memory_space<vmem>>, vector<4x256xbf16>,
    %c239_i32_70 = arith.constant 239 : i32
    %121 = tpu.dynamic_rotate %83 by %c239_i32_70 dim 1 : vector<4x256xf32>, i32 -> vector<4x256xf32>
    %cst_71 = arith.constant 0.000000e+00 : f32
    %122 = vector.broadcast %cst_71 : f32 to vector<4x256xf32>
    %123 = arith.select %34, %121, %122 : vector<4x256xi1>, vector<4x256xf32>
    %124 = arith.truncf %123 : vector<4x256xf32> to vector<4x256xbf16>
    %c32_72 = arith.constant 32 : index
    %c0_73 = arith.constant 0 : index
    %125 = vector.load %arg5[%c32_72, %c0_73] : memref<38x256xbf16, #tpu.memory_space<vmem>>, vector<4x256xbf16>
    tpu.vector_store %arg5[%c32_72, %c0_73], %124 {strides = array<i32>} : memref<38x256xbf16, #tpu.memory_space<vmem>>, vector<4x256xbf16>,
    %c0_74 = arith.constant 0 : index
    %c0_75 = arith.constant 0 : index
    %126 = vector.load %arg3[%c0_74, %c0_75] : memref<4x38xbf16, #tpu.memory_space<vmem>>, vector<4x38xbf16>
    %c0_76 = arith.constant 0 : index
    %c0_77 = arith.constant 0 : index
    %127 = vector.load %arg5[%c0_76, %c0_77] : memref<38x256xbf16, #tpu.memory_space<vmem>>, vector<38x256xbf16>
    %cst_78 = arith.constant dense<0.000000e+00> : vector<4x256xf32>
    %128 = tpu.matmul %126, %127, %cst_78 {dimension_numbers = #tpu.dot_dimension_numbers<[1], [0], [0], [1], [0, 0, 1, 1], [], []>} : vector<4x38xbf16>, vector<38x256xbf16>, vector<4x256xf32> -> vector<4x256xf32>
    %129 = arith.addf %128, %1 : vector<4x256xf32>
    %cst_79 = arith.constant 0.000000e+00 : f32
    %130 = vector.broadcast %cst_79 : f32 to vector<4x256xf32>
    %131 = arith.maximumf %129, %130 : vector<4x256xf32>
    %c0_80 = arith.constant 0 : index
    %c0_81 = arith.constant 0 : index
    %c0_82 = arith.constant 0 : index
    %132 = vector.load %arg4[%c0_80, %c0_81, %c0_82] : memref<1x4x256xf32, #tpu.memory_space<vmem>>, vector<1x4x256xf32>
    %133 = vector.shape_cast %132 : vector<1x4x256xf32> to vector<4x256xf32>
    %134 = vector.shape_cast %131 : vector<4x256xf32> to vector<1x4x256xf32>
    tpu.vector_store %arg4[%c0_80, %c0_81, %c0_82], %134 {strides = array<i32>} : memref<1x4x256xf32, #tpu.memory_space<vmem>>, vector<1x4x256xf32>,
    return
  }
  func.func @transform_0(%arg0: i32) -> (i32, i32, i32) {
    %c0_i32 = arith.constant 0 : i32
    %c0_i32_0 = arith.constant 0 : i32
    %c0_i32_1 = arith.constant 0 : i32
    return %arg0, %c0_i32, %c0_i32_0 : i32, i32, i32
  }
  func.func @transform_1(%arg0: i32) -> (i32, i32) {
    %c0_i32 = arith.constant 0 : i32
    %c0_i32_0 = arith.constant 0 : i32
    %c0_i32_1 = arith.constant 0 : i32
    return %c0_i32, %c0_i32_0 : i32, i32
  }
  func.func @transform_2(%arg0: i32) -> (i32, i32) {
    %c0_i32 = arith.constant 0 : i32
    %c0_i32_0 = arith.constant 0 : i32
    %c0_i32_1 = arith.constant 0 : i32
    return %c0_i32, %c0_i32_0 : i32, i32
  }
  func.func @transform_3(%arg0: i32) -> (i32, i32, i32) {
    %c0_i32 = arith.constant 0 : i32
    %c0_i32_0 = arith.constant 0 : i32
    %c0_i32_1 = arith.constant 0 : i32
    return %arg0, %c0_i32, %c0_i32_0 : i32, i32, i32
  }
}

</mosaic_0001>

<llo_original>
// kernel: tpu_custom_call.1
$region0: #{tpu_custom_call.1}
  #allocation0 [shape = 'u32[]', space=smem, size = 0x4, offset = 0x4, fixed_abs, tag = 'smem constant byte address 0x4 - core index']
  #allocation1 [shape = 'u32[144,128]{1,0:T(1,128)}', space=vmem, size = 0x12000, scoped, tag = 'internal scratch']
  #allocation2 [shape = 'bf16[38,256]{1,0:T(8,128)(2,1)}', space=vmem, size = 0x5000, scoped, tag = 'scratch operand']
  %s0 = inlined_call_operand.hbm [shape: f32[2,4,256], index: 0, kind: input, shape index: {}]
  %s1 = inlined_call_operand.vmem [shape: bf16[4,38], index: 1, kind: input, shape index: {}]
  %s2 = inlined_call_operand.vmem [shape: bf16[4,38], index: 2, kind: input, shape index: {}]
  %s3 = inlined_call_operand.hbm [shape: f32[2,4,256], index: 3, kind: output, shape index: {}]
  %s4 = sld [smem:[#allocation0]]
  $region49: #{tpu_custom_call.1} parent=0
    _
  %s6 = ssub.s32 1, %s4
  %s7 = scalar_select 0, %s6, %s4
  $region1: #{tpu_custom_call.1} parent=0
    #allocation3 [shape = 'u8[8192]{0}', space=vmem, size = 0x2000, scoped, tag = 'input window, operand 0']
    #allocation4 [shape = 's32[2]{0}', space=sflag, size = 0x8, scoped, tag = 'scoped memory for tpu_custom_call.1']
    #allocation5 [shape = 's32[2]{0}', space=sflag, size = 0x8, scoped, tag = 'scoped memory for tpu_custom_call.1']
    #allocation6 [shape = 'u8[8192]{0}', space=vmem, size = 0x2000, scoped, tag = 'output window, operand 0']
    %8 = vsyncpa [#allocation4], 0
    %s9 = scalar_lea.sflag [#allocation4], 1
    %10 = vsyncpa %s9, 0
    %11 = vsyncpa [#allocation5], 0
    %s12 = scalar_lea.sflag [#allocation5], 1
    %13 = vsyncpa %s12, 0
    loop: start=0, step=1, limit=4
    $region2: #{tpu_custom_call.1} parent=1 // loop_pre_header
      _
    $region3: #{tpu_custom_call.1} parent=1 // loop_header
      %s15 = sphi 0, %s19
      %p16 = scmp.ge.s32.totalorder %s15, 4
      %s25 = sphi 0, %s27
      %s28 = sphi 0, %s25
      %s29 = sphi 0, %s28
      %s45 = sphi 0, %s29
      %s49 = sphi 0, %s49
      %s51 = sphi 0, %s49
      %s52 = sphi 0, %s51
      %s66 = sphi 0, %s52
      %s70 = sphi 0, %s70
      %s72 = sphi 0, %s70
      %s73 = sphi 0, %s72
      %s87 = sphi 0, %s73
      %s93 = sphi 0, %s95
      %s96 = sphi 0, %s93
      %s97 = sphi 0, %s96
      %s113 = sphi 0, %s97
    $region4: #{tpu_custom_call.1} parent=1 // loop_header_branch
      %18 = sbr.rel (%p16) target = $region8
    $region5: #{tpu_custom_call.1} parent=1 // loop_body
      %s20 = ssub.s32 %s15, 1
      %s21 = ssub.s32 %s15, 2
      %s22 = sadd.s32 %s15, 1
      %s23 = ssub.s32 %s15, %s22
      %p24 = scmp.eq.s32.totalorder %s23, 0
      %s26 = sadd.s32 %s25, 1
      %s27 = scalar_select %p24, %s25, %s26
      %p30 = pneg %p24
      %p31 = scmp.eq.s32.totalorder %s15, 1
      %p32 = por %p30, %p31
      %p33 = scmp.ne.s32.totalorder %s25, %s28
      %p34 = scmp.eq.s32.totalorder %s15, 0
      %p35 = por %p33, %p34
      %p36 = scmp.ne.s32.totalorder %s25, %s28
      %p37 = scmp.eq.s32.totalorder %s20, 1
      %p38 = por %p36, %p37
      %p39 = scmp.ne.s32.totalorder %s28, %s29
      %p40 = scmp.eq.s32.totalorder %s20, 0
      %p41 = por %p39, %p40
      %p42 = scmp.ne.s32.totalorder %s28, %s29
      %p43 = scmp.eq.s32.totalorder %s21, 1
      %p44 = por %p42, %p43
      %p46 = scmp.ne.s32.totalorder %s29, %s45
      %p47 = scmp.eq.s32.totalorder %s21, 0
      %p48 = por %p46, %p47
      %s50 = sadd.s32 %s49, 1
      %p53 = scmp.eq.s32.totalorder %s15, 1
      %p54 = scmp.ne.s32.totalorder %s49, %s51
      %p55 = scmp.eq.s32.totalorder %s15, 0
      %p56 = por %p54, %p55
      %p57 = scmp.ne.s32.totalorder %s49, %s51
      %p58 = scmp.eq.s32.totalorder %s20, 1
      %p59 = por %p57, %p58
      %p60 = scmp.ne.s32.totalorder %s51, %s52
      %p61 = scmp.eq.s32.totalorder %s20, 0
      %p62 = por %p60, %p61
      %p63 = scmp.ne.s32.totalorder %s51, %s52
      %p64 = scmp.eq.s32.totalorder %s21, 1
      %p65 = por %p63, %p64
      %p67 = scmp.ne.s32.totalorder %s52, %s66
      %p68 = scmp.eq.s32.totalorder %s21, 0
      %p69 = por %p67, %p68
      %s71 = sadd.s32 %s70, 1
      %p74 = scmp.eq.s32.totalorder %s15, 1
      %p75 = scmp.ne.s32.totalorder %s70, %s72
      %p76 = scmp.eq.s32.totalorder %s15, 0
      %p77 = por %p75, %p76
      %p78 = scmp.ne.s32.totalorder %s70, %s72
      %p79 = scmp.eq.s32.totalorder %s20, 1
      %p80 = por %p78, %p79
      %p81 = scmp.ne.s32.totalorder %s72, %s73
      %p82 = scmp.eq.s32.totalorder %s20, 0
      %p83 = por %p81, %p82
      %p84 = scmp.ne.s32.totalorder %s72, %s73
      %p85 = scmp.eq.s32.totalorder %s21, 1
      %p86 = por %p84, %p85
      %p88 = scmp.ne.s32.totalorder %s73, %s87
      %p89 = scmp.eq.s32.totalorder %s21, 0
      %p90 = por %p88, %p89
      %s91 = ssub.s32 %s15, %s22
      %p92 = scmp.eq.s32.totalorder %s91, 0
      %s94 = sadd.s32 %s93, 1
      %s95 = scalar_select %p92, %s93, %s94
      %p98 = pneg %p92
      %p99 = scmp.eq.s32.totalorder %s15, 1
      %p100 = por %p98, %p99
      %p101 = scmp.ne.s32.totalorder %s93, %s96
      %p102 = scmp.eq.s32.totalorder %s15, 0
      %p103 = por %p101, %p102
      %p104 = scmp.ne.s32.totalorder %s93, %s96
      %p105 = scmp.eq.s32.totalorder %s20, 1
      %p106 = por %p104, %p105
      %p107 = scmp.ne.s32.totalorder %s96, %s97
      %p108 = scmp.eq.s32.totalorder %s20, 0
      %p109 = por %p107, %p108
      %p110 = scmp.ne.s32.totalorder %s96, %s97
      %p111 = scmp.eq.s32.totalorder %s21, 1
      %p112 = por %p110, %p111
      %p114 = scmp.ne.s32.totalorder %s97, %s113
      %p115 = scmp.eq.s32.totalorder %s21, 0
      %p116 = por %p114, %p115
      %p117 = scmp.le.s32.totalorder 1, %s15
      %p118 = scmp.lt.s32.totalorder %s15, 3
      %p119 = pnand %p117, %p118
      %p120 = pneg %p119
      // Predicated region
      $region9: #{tpu_custom_call.1} parent=5 // pred_check
        _
      $region10: #{tpu_custom_call.1} parent=5 // pred_check_branch
        %122 = sbr.rel (%p119) target = $region12
      $region11: #{tpu_custom_call.1} parent=5 // pred_region
        %s123 = ssub.s32 %s15, 1
        // Predicated region
        $region13: #{tpu_custom_call.1} parent=11 // pred_check
          %p124 = pneg %p62
        $region14: #{tpu_custom_call.1} parent=11 // pred_check_branch
          %126 = sbr.rel (%p124) target = $region16
        $region15: #{tpu_custom_call.1} parent=11 // pred_region
          _
        $region16: #{tpu_custom_call.1} parent=11 // pred_fallthru
          _
        // Predicated region
        $region17: #{tpu_custom_call.1} parent=11 // pred_check
          %p127 = pneg %p83
        $region18: #{tpu_custom_call.1} parent=11 // pred_check_branch
          %129 = sbr.rel (%p127) target = $region20
        $region19: #{tpu_custom_call.1} parent=11 // pred_region
          _
        $region20: #{tpu_custom_call.1} parent=11 // pred_fallthru
          _
      $region12: #{tpu_custom_call.1} parent=5 // pred_fallthru
        _
      %p130 = scmp.lt.s32.totalorder %s15, 2
      // Predicated region
      $region21: #{tpu_custom_call.1} parent=5 // pred_check
        %p131 = pneg %p130
      $region22: #{tpu_custom_call.1} parent=5 // pred_check_branch
        %133 = sbr.rel (%p131) target = $region24
      $region23: #{tpu_custom_call.1} parent=5 // pred_region
        // Predicated region
        $region25: #{tpu_custom_call.1} parent=23 // pred_check
          %p134 = pneg %p35
        $region26: #{tpu_custom_call.1} parent=23 // pred_check_branch
          %136 = sbr.rel (%p134) target = $region28
        $region27: #{tpu_custom_call.1} parent=23 // pred_region
          %s137 = sand.u32 %s25, 1
          %s138 = scalar_lea.sflag [#allocation4], %s137
          %s139 = sand.u32 %s25, 1
          %s140 = smul.addr %s139, 8
          %s141 = scalar_lea.vmem [#allocation3], %s140
          %s143 = ssub.s32 128, 128
          %144 = vsyncadd %s138, %s143
          %s145 = smul.addr %s15, 2
          %s146 = smul.addr %s145, 64
          %s147 = scalar_lea.hbm %s0, %s146
          %s149 = sshll.u32 %s141, 4
          %s150 = int_to_ptr.vmem [resolvable:$true] %s149
          %152 = dma.hbm_to_vmem [thread:$0]  %s147, 128, %s150, %s138
        $region28: #{tpu_custom_call.1} parent=23 // pred_fallthru
          _
      $region24: #{tpu_custom_call.1} parent=5 // pred_fallthru
        _
      %p153 = scmp.le.s32.totalorder 1, %s15
      %p154 = scmp.lt.s32.totalorder %s15, 3
      %p155 = pnand %p153, %p154
      %p156 = pneg %p155
      // Predicated region
      $region29: #{tpu_custom_call.1} parent=5 // pred_check
        _
      $region30: #{tpu_custom_call.1} parent=5 // pred_check_branch
        %158 = sbr.rel (%p155) target = $region32
      $region31: #{tpu_custom_call.1} parent=5 // pred_region
        %s159 = ssub.s32 %s15, 1
        %s160 = sand.u32 %s28, 1
        %s161 = scalar_lea.sflag [#allocation4], %s160
        %s162 = sand.u32 %s28, 1
        %s163 = smul.addr %s162, 8
        %s164 = scalar_lea.vmem [#allocation3], %s163
        // Predicated region
        $region33: #{tpu_custom_call.1} parent=31 // pred_check
          %p165 = pneg %p41
        $region34: #{tpu_custom_call.1} parent=31 // pred_check_branch
          %167 = sbr.rel (%p165) target = $region36
        $region35: #{tpu_custom_call.1} parent=31 // pred_region
          %168 = dma.done %s161, 128
        $region36: #{tpu_custom_call.1} parent=31 // pred_fallthru
          _
        %s169 = sand.u32 %s28, 1
        %s170 = scalar_lea.sflag [#allocation4], %s169
        %s171 = sand.u32 %s28, 1
        %s172 = smul.addr %s171, 8
        %s173 = scalar_lea.vmem [#allocation3], %s172
        %p174 = pneg %p41
        %p175 = pneg %p38
        %p176 = pneg %p62
        %p177 = pneg %p59
        %p178 = pneg %p83
        %p179 = pneg %p80
        %p180 = pneg %p109
        %p181 = pneg %p106
        %s182 = sand.u32 %s96, 1
        %s183 = scalar_lea.sflag [#allocation5], %s182
        %s184 = sand.u32 %s96, 1
        %s185 = smul.addr %s184, 8
        %s186 = scalar_lea.vmem [#allocation6], %s185
        %v189 = vld [vmem:[%s164] sm:$0xff]
        %v190 = vlaneseq
        %v191 = vand.u32 %v190, 127
        %v192 = vadd.s32 %v191, 128
        %v193 = vshra.s32 %v191, 4
        %v194 = vshra.s32 %v192, 4
        %v195 = vand.u32 %v191, 15
        %v196 = vand.u32 %v192, 15
        %vm197 = vcmp.ge.s32.totalorder %v193, 1
        %vm198 = vcmp.ge.s32.totalorder %v194, 1
        %vm199 = vcmp.ge.s32.totalorder %v195, 1
        %vm200 = vcmp.ge.s32.totalorder %v196, 1
        %vm201 = vmand %vm197, %vm199
        %vm202 = vmand %vm198, %vm200
        %vm203 = vcmp.lt.s32.totalorder %v195, 15
        %vm204 = vcmp.lt.s32.totalorder %v196, 15
        %vm205 = vmand %vm197, %vm203
        %vm206 = vmand %vm198, %vm204
        %vm207 = vcmp.lt.s32.totalorder %v193, 15
        %vm208 = vcmp.lt.s32.totalorder %v194, 15
        %vm209 = vmand %vm207, %vm199
        %vm210 = vmand %vm208, %vm200
        %vm211 = vmand %vm207, %vm203
        %vm212 = vmand %vm208, %vm204
        %213 = vst [vmem:[#allocation2 + $0x20] sm:$0x44] 1065369472
        %v215 = vcombine.high %v189, %v189
        %217 = vrot.lane.b32.xlu0 %v189, 17
        %v218 = vpop.permute.xlu0 %217
        %219 = vrot.lane.b32.xlu0 %v215, 17
        %v220 = vpop.permute.xlu0 %219
        %vm221 = vcmp.lt.s32.totalorder %v191, 17
        %v222 = vsel %vm221, %v218, %v220
        %v223 = vsel %vm221, %v220, %v218
        %v224 = vsel %vm201, %v223, 0.0
        %v225 = vsel %vm202, %v222, 0.0
        %v226 = vpack.c.bf16 %v224, %v224
        %v227 = vpack.c.bf16 %v225, %v225
        %v230 = vunpack.c.l.b16 %v226
        %v231 = vunpack.c.l.b16 %v227
        %v232 = vpack.c.b16 %v231, %v230
        %234 = vst [vmem:[#allocation2] sm:$0x33] %v232
        %235 = vrot.lane.b32.xlu0 %v189, 16
        %v236 = vpop.permute.xlu0 %235
        %237 = vrot.lane.b32.xlu0 %v215, 16
        %v238 = vpop.permute.xlu0 %237
        %vm239 = vcmp.lt.s32.totalorder %v191, 16
        %v240 = vsel %vm239, %v236, %v238
        %v241 = vsel %vm239, %v238, %v236
        %v242 = vsel %vm197, %v241, 0.0
        %v243 = vsel %vm198, %v240, 0.0
        %v244 = vpack.c.bf16 %v242, %v242
        %v245 = vpack.c.bf16 %v243, %v243
        %v248 = vunpack.c.l.b16 %v244
        %v249 = vunpack.c.l.b16 %v245
        %v250 = vpack.c.b16 %v249, %v248
        %v251 = vrot.slane %v250, 6
        %253 = vst [vmem:[#allocation2] sm:$0xcc] %v251
        %254 = vrot.lane.b32.xlu0 %v189, 15
        %v255 = vpop.permute.xlu0 %254
        %256 = vrot.lane.b32.xlu0 %v215, 15
        %v257 = vpop.permute.xlu0 %256
        %vm258 = vcmp.lt.s32.totalorder %v191, 15
        %v259 = vsel %vm258, %v255, %v257
        %v260 = vsel %vm258, %v257, %v255
        %v261 = vsel %vm205, %v260, 0.0
        %v262 = vsel %vm206, %v259, 0.0
        %v263 = vpack.c.bf16 %v261, %v261
        %v264 = vpack.c.bf16 %v262, %v262
        %v267 = vunpack.c.l.b16 %v263
        %v268 = vunpack.c.l.b16 %v264
        %v269 = vpack.c.b16 %v268, %v267
        %271 = vst [vmem:[#allocation2 + $0x8] sm:$0x33] %v269
        %272 = vrot.lane.b32.xlu0 %v189, 1
        %v273 = vpop.permute.xlu0 %272
        %274 = vrot.lane.b32.xlu0 %v215, 1
        %v275 = vpop.permute.xlu0 %274
        %vm276 = vcmp.lt.s32.totalorder %v191, 1
        %v277 = vsel %vm276, %v273, %v275
        %v278 = vsel %vm276, %v275, %v273
        %v279 = vsel %vm199, %v278, 0.0
        %v280 = vsel %vm200, %v277, 0.0
        %v281 = vpack.c.bf16 %v279, %v279
        %v282 = vpack.c.bf16 %v280, %v280
        %v285 = vunpack.c.l.b16 %v281
        %v286 = vunpack.c.l.b16 %v282
        %v287 = vpack.c.b16 %v286, %v285
        %v288 = vrot.slane %v287, 6
        %290 = vst [vmem:[#allocation2 + $0x8] sm:$0xcc] %v288
        %v291 = vpack.c.bf16 %v189, %v189
        %v292 = vpack.c.bf16 %v215, %v215
        %v295 = vunpack.c.l.b16 %v291
        %v296 = vunpack.c.l.b16 %v292
        %v297 = vpack.c.b16 %v296, %v295
        %299 = vst [vmem:[#allocation2 + $0x10] sm:$0x33] %v297
        %300 = vrot.lane.b32.xlu0 %v189, 127
        %v301 = vpop.permute.xlu0 %300
        %302 = vrot.lane.b32.xlu0 %v215, 127
        %v303 = vpop.permute.xlu0 %302
        %vm304 = vcmp.lt.s32.totalorder %v191, 127
        %v305 = vsel %vm304, %v301, %v303
        %v306 = vsel %vm304, %v303, %v301
        %v307 = vsel %vm203, %v305, 0.0
        %v308 = vsel %vm204, %v306, 0.0
        %v309 = vpack.c.bf16 %v307, %v307
        %v310 = vpack.c.bf16 %v308, %v308
        %v313 = vunpack.c.l.b16 %v309
        %v314 = vunpack.c.l.b16 %v310
        %v315 = vpack.c.b16 %v314, %v313
        %v316 = vrot.slane %v315, 6
        %318 = vst [vmem:[#allocation2 + $0x10] sm:$0xcc] %v316
        %319 = vrot.lane.b32.xlu0 %v189, 113
        %v320 = vpop.permute.xlu0 %319
        %321 = vrot.lane.b32.xlu0 %v215, 113
        %v322 = vpop.permute.xlu0 %321
        %vm323 = vcmp.lt.s32.totalorder %v191, 113
        %v324 = vsel %vm323, %v320, %v322
        %v325 = vsel %vm323, %v322, %v320
        %v326 = vsel %vm209, %v324, 0.0
        %v327 = vsel %vm210, %v325, 0.0
        %v328 = vpack.c.bf16 %v326, %v326
        %v329 = vpack.c.bf16 %v327, %v327
        %v332 = vunpack.c.l.b16 %v328
        %v333 = vunpack.c.l.b16 %v329
        %v334 = vpack.c.b16 %v333, %v332
        %336 = vst [vmem:[#allocation2 + $0x18] sm:$0x33] %v334
        %337 = vrot.lane.b32.xlu0 %v189, 112
        %v338 = vpop.permute.xlu0 %337
        %339 = vrot.lane.b32.xlu0 %v215, 112
        %v340 = vpop.permute.xlu0 %339
        %vm341 = vcmp.lt.s32.totalorder %v191, 112
        %v342 = vsel %vm341, %v338, %v340
        %v343 = vsel %vm341, %v340, %v338
        %v344 = vsel %vm207, %v342, 0.0
        %v345 = vsel %vm208, %v343, 0.0
        %v346 = vpack.c.bf16 %v344, %v344
        %v347 = vpack.c.bf16 %v345, %v345
        %v350 = vunpack.c.l.b16 %v346
        %v351 = vunpack.c.l.b16 %v347
        %v352 = vpack.c.b16 %v351, %v350
        %v353 = vrot.slane %v352, 6
        %355 = vst [vmem:[#allocation2 + $0x18] sm:$0xcc] %v353
        %356 = vrot.lane.b32.xlu0 %v189, 111
        %v357 = vpop.permute.xlu0 %356
        %358 = vrot.lane.b32.xlu0 %v215, 111
        %v359 = vpop.permute.xlu0 %358
        %vm360 = vcmp.lt.s32.totalorder %v191, 111
        %v361 = vsel %vm360, %v357, %v359
        %v362 = vsel %vm360, %v359, %v357
        %v363 = vsel %vm211, %v361, 0.0
        %v364 = vsel %vm212, %v362, 0.0
        %v365 = vpack.c.bf16 %v363, %v363
        %v366 = vpack.c.bf16 %v364, %v364
        %v369 = vunpack.c.l.b16 %v365
        %v370 = vunpack.c.l.b16 %v366
        %v371 = vpack.c.b16 %v370, %v369
        %373 = vst [vmem:[#allocation2 + $0x20] sm:$0x33] %v371
        %v374 = vld [vmem:[%s1] sm:$0x3]
        %v375 = vld [vmem:[#allocation2] sm:$0xff]
        %v376 = vld [vmem:[#allocation2 + $0x8] sm:$0xff]
        %v377 = vld [vmem:[#allocation2 + $0x10] sm:$0xff]
        %v378 = vld [vmem:[#allocation2 + $0x18] sm:$0xff]
        %v379 = vld [vmem:[#allocation2 + $0x20] sm:$0x77]
        %v385 = vunpack.c.l.b16 %v375
        %v386 = vunpack.c.h.b16 %v375
        %v387 = vunpack.c.l.b16 %v376
        %v388 = vunpack.c.h.b16 %v376
        %v389 = vunpack.c.l.b16 %v377
        %v390 = vunpack.c.h.b16 %v377
        %v391 = vunpack.c.l.b16 %v378
        %v392 = vunpack.c.h.b16 %v378
        %v393 = vunpack.c.l.b16 %v379
        %v394 = vunpack.c.h.b16 %v379
        %v395 = vpack.c.b16 %v387, %v385
        %v396 = vpack.c.b16 %v388, %v386
        %v397 = vpack.c.b16 %v391, %v389
        %v398 = vpack.c.b16 %v392, %v390
        %v399 = vpack.c.b16 %v393, %v393
        %v400 = vpack.c.b16 %v394, %v394
        %vm405 = vcmask 310272
        %v407 = vsel %vm405, %v374, 0
        %vm409 = vcmask 1042432
        %v411 = vsel %vm409, %v399, 0
        %v414 = vsel %vm409, %v400, 0
        %416 = vmatprep.subr.bf16.mxu0 %v396
        %417 = vmatpush1.bf16.msra.mxu0 %v395
        %418 = vmatprep.subr.bf16.mxu0 %v398
        %419 = vmatpush1.bf16.msra.mxu0 %v397
        %420 = vmatprep.subr.bf16.mxu0 %v414
        %421 = vmatpush1.bf16.msra.mxu0 %v411
        %422 = vmatprep.subr.bf16.mxu0 0
        %423 = vmatpush1.bf16.msra.mxu0 0
        %424 = vmatprep.subr.bf16.mxu0 0
        %425 = vmatpush1.bf16.msra.mxu0 0
        %426 = vmatprep.subr.bf16.mxu0 0
        %427 = vmatpush1.bf16.msra.mxu0 0
        %428 = vmatprep.subr.bf16.mxu0 0
        %429 = vmatpush1.bf16.msra.mxu0 0
        %430 = vmatprep.subr.bf16.mxu0 0
        %431 = vmatpush1.bf16.msra.mxu0 0
        %432 = vmatprep.subr.bf16.mxu0 0
        %433 = vmatpush1.bf16.msra.mxu0 0
        %434 = vmatprep.subr.bf16.mxu0 0
        %435 = vmatpush1.bf16.msra.mxu0 0
        %436 = vmatprep.subr.bf16.mxu0 0
        %437 = vmatpush1.bf16.msra.mxu0 0
        %438 = vmatprep.subr.bf16.mxu0 0
        %439 = vmatpush1.bf16.msra.mxu0 0
        %440 = vmatprep.subr.bf16.mxu0 0
        %441 = vmatpush1.bf16.msra.mxu0 0
        %442 = vmatprep.subr.bf16.mxu0 0
        %443 = vmatpush1.bf16.msra.mxu0 0
        %444 = vmatprep.subr.bf16.mxu0 0
        %445 = vmatpush1.bf16.msra.mxu0 0
        %446 = vmatprep.subr.bf16.mxu0 0
        %447 = vmatpush1.bf16.msra.mxu0 0
        %448 = vmatprep.mubr.bf16.mxu0 0
        %449 = vmatmul.mubr.bf16.gmra.mrb[0].mxu0 %v407
        %v450 = vpop.f32.mrb[0].mxu0
        %v451 = vadd.f32 0.0, %v450
        %v452 = vpop.f32.mrb[0].mxu0
        %v453 = vadd.f32 0.0, %v452
        %v454 = vpop.f32.mrb[0].mxu0
        %v455 = vpop.f32.mrb[0].mxu0
        %456 = vdwg.mxu0
        %v457 = vmax.f32 %v451, 0.0
        %v458 = vmax.f32 %v453, 0.0
        %459 = vrot.lane.b32.xlu0 %v457, 17
        %v460 = vpop.permute.xlu0 %459
        %461 = vrot.lane.b32.xlu0 %v458, 17
        %v462 = vpop.permute.xlu0 %461
        %v463 = vsel %vm221, %v460, %v462
        %v464 = vsel %vm221, %v462, %v460
        %v465 = vsel %vm201, %v464, 0.0
        %v466 = vsel %vm202, %v463, 0.0
        %v467 = vpack.c.bf16 %v465, %v465
        %v468 = vpack.c.bf16 %v466, %v466
        %v471 = vunpack.c.l.b16 %v467
        %v472 = vunpack.c.l.b16 %v468
        %v473 = vpack.c.b16 %v472, %v471
        %475 = vst [vmem:[#allocation2] sm:$0x33] %v473
        %476 = vrot.lane.b32.xlu0 %v457, 16
        %v477 = vpop.permute.xlu0 %476
        %478 = vrot.lane.b32.xlu0 %v458, 16
        %v479 = vpop.permute.xlu0 %478
        %v480 = vsel %vm239, %v477, %v479
        %v481 = vsel %vm239, %v479, %v477
        %v482 = vsel %vm197, %v481, 0.0
        %v483 = vsel %vm198, %v480, 0.0
        %v484 = vpack.c.bf16 %v482, %v482
        %v485 = vpack.c.bf16 %v483, %v483
        %v488 = vunpack.c.l.b16 %v484
        %v489 = vunpack.c.l.b16 %v485
        %v490 = vpack.c.b16 %v489, %v488
        %v491 = vrot.slane %v490, 6
        %493 = vst [vmem:[#allocation2] sm:$0xcc] %v491
        %494 = vrot.lane.b32.xlu0 %v457, 15
        %v495 = vpop.permute.xlu0 %494
        %496 = vrot.lane.b32.xlu0 %v458, 15
        %v497 = vpop.permute.xlu0 %496
        %v498 = vsel %vm258, %v495, %v497
        %v499 = vsel %vm258, %v497, %v495
        %v500 = vsel %vm205, %v499, 0.0
        %v501 = vsel %vm206, %v498, 0.0
        %v502 = vpack.c.bf16 %v500, %v500
        %v503 = vpack.c.bf16 %v501, %v501
        %v506 = vunpack.c.l.b16 %v502
        %v507 = vunpack.c.l.b16 %v503
        %v508 = vpack.c.b16 %v507, %v506
        %510 = vst [vmem:[#allocation2 + $0x8] sm:$0x33] %v508
        %511 = vrot.lane.b32.xlu0 %v457, 1
        %v512 = vpop.permute.xlu0 %511
        %513 = vrot.lane.b32.xlu0 %v458, 1
        %v514 = vpop.permute.xlu0 %513
        %v515 = vsel %vm276, %v512, %v514
        %v516 = vsel %vm276, %v514, %v512
        %v517 = vsel %vm199, %v516, 0.0
        %v518 = vsel %vm200, %v515, 0.0
        %v519 = vpack.c.bf16 %v517, %v517
        %v520 = vpack.c.bf16 %v518, %v518
        %v523 = vunpack.c.l.b16 %v519
        %v524 = vunpack.c.l.b16 %v520
        %v525 = vpack.c.b16 %v524, %v523
        %v526 = vrot.slane %v525, 6
        %528 = vst [vmem:[#allocation2 + $0x8] sm:$0xcc] %v526
        %v529 = vpack.c.bf16 %v457, %v457
        %v530 = vpack.c.bf16 %v458, %v458
        %v533 = vunpack.c.l.b16 %v529
        %v534 = vunpack.c.l.b16 %v530
        %v535 = vpack.c.b16 %v534, %v533
        %537 = vst [vmem:[#allocation2 + $0x10] sm:$0x33] %v535
        %538 = vrot.lane.b32.xlu0 %v457, 127
        %v539 = vpop.permute.xlu0 %538
        %540 = vrot.lane.b32.xlu0 %v458, 127
        %v541 = vpop.permute.xlu0 %540
        %v542 = vsel %vm304, %v539, %v541
        %v543 = vsel %vm304, %v541, %v539
        %v544 = vsel %vm203, %v542, 0.0
        %v545 = vsel %vm204, %v543, 0.0
        %v546 = vpack.c.bf16 %v544, %v544
        %v547 = vpack.c.bf16 %v545, %v545
        %v550 = vunpack.c.l.b16 %v546
        %v551 = vunpack.c.l.b16 %v547
        %v552 = vpack.c.b16 %v551, %v550
        %v553 = vrot.slane %v552, 6
        %555 = vst [vmem:[#allocation2 + $0x10] sm:$0xcc] %v553
        %556 = vrot.lane.b32.xlu0 %v457, 113
        %v557 = vpop.permute.xlu0 %556
        %558 = vrot.lane.b32.xlu0 %v458, 113
        %v559 = vpop.permute.xlu0 %558
        %v560 = vsel %vm323, %v557, %v559
        %v561 = vsel %vm323, %v559, %v557
        %v562 = vsel %vm209, %v560, 0.0
        %v563 = vsel %vm210, %v561, 0.0
        %v564 = vpack.c.bf16 %v562, %v562
        %v565 = vpack.c.bf16 %v563, %v563
        %v568 = vunpack.c.l.b16 %v564
        %v569 = vunpack.c.l.b16 %v565
        %v570 = vpack.c.b16 %v569, %v568
        %572 = vst [vmem:[#allocation2 + $0x18] sm:$0x33] %v570
        %573 = vrot.lane.b32.xlu0 %v457, 112
        %v574 = vpop.permute.xlu0 %573
        %575 = vrot.lane.b32.xlu0 %v458, 112
        %v576 = vpop.permute.xlu0 %575
        %v577 = vsel %vm341, %v574, %v576
        %v578 = vsel %vm341, %v576, %v574
        %v579 = vsel %vm207, %v577, 0.0
        %v580 = vsel %vm208, %v578, 0.0
        %v581 = vpack.c.bf16 %v579, %v579
        %v582 = vpack.c.bf16 %v580, %v580
        %v585 = vunpack.c.l.b16 %v581
        %v586 = vunpack.c.l.b16 %v582
        %v587 = vpack.c.b16 %v586, %v585
        %v588 = vrot.slane %v587, 6
        %590 = vst [vmem:[#allocation2 + $0x18] sm:$0xcc] %v588
        %591 = vrot.lane.b32.xlu0 %v457, 111
        %v592 = vpop.permute.xlu0 %591
        %593 = vrot.lane.b32.xlu0 %v458, 111
        %v594 = vpop.permute.xlu0 %593
        %v595 = vsel %vm360, %v592, %v594
        %v596 = vsel %vm360, %v594, %v592
        %v597 = vsel %vm211, %v595, 0.0
        %v598 = vsel %vm212, %v596, 0.0
        %v599 = vpack.c.bf16 %v597, %v597
        %v600 = vpack.c.bf16 %v598, %v598
        %v603 = vunpack.c.l.b16 %v599
        %v604 = vunpack.c.l.b16 %v600
        %v605 = vpack.c.b16 %v604, %v603
        %607 = vst [vmem:[#allocation2 + $0x20] sm:$0x33] %v605
        %v608 = vld [vmem:[%s2] sm:$0x3]
        %v609 = vld [vmem:[#allocation2] sm:$0xff]
        %v610 = vld [vmem:[#allocation2 + $0x8] sm:$0xff]
        %v611 = vld [vmem:[#allocation2 + $0x10] sm:$0xff]
        %v612 = vld [vmem:[#allocation2 + $0x18] sm:$0xff]
        %v613 = vld [vmem:[#allocation2 + $0x20] sm:$0x77]
        %v619 = vunpack.c.l.b16 %v609
        %v620 = vunpack.c.h.b16 %v609
        %v621 = vunpack.c.l.b16 %v610
        %v622 = vunpack.c.h.b16 %v610
        %v623 = vunpack.c.l.b16 %v611
        %v624 = vunpack.c.h.b16 %v611
        %v625 = vunpack.c.l.b16 %v612
        %v626 = vunpack.c.h.b16 %v612
        %v627 = vunpack.c.l.b16 %v613
        %v628 = vunpack.c.h.b16 %v613
        %v629 = vpack.c.b16 %v621, %v619
        %v630 = vpack.c.b16 %v622, %v620
        %v631 = vpack.c.b16 %v625, %v623
        %v632 = vpack.c.b16 %v626, %v624
        %v633 = vpack.c.b16 %v627, %v627
        %v634 = vpack.c.b16 %v628, %v628
        %v640 = vsel %vm405, %v608, 0
        %v643 = vsel %vm409, %v633, 0
        %v646 = vsel %vm409, %v634, 0
        %648 = vmatprep.subr.bf16.mxu0 %v630
        %649 = vmatpush1.bf16.msra.mxu0 %v629
        %650 = vmatprep.subr.bf16.mxu0 %v632
        %651 = vmatpush1.bf16.msra.mxu0 %v631
        %652 = vmatprep.subr.bf16.mxu0 %v646
        %653 = vmatpush1.bf16.msra.mxu0 %v643
        %654 = vmatprep.subr.bf16.mxu0 0
        %655 = vmatpush1.bf16.msra.mxu0 0
        %656 = vmatprep.subr.bf16.mxu0 0
        %657 = vmatpush1.bf16.msra.mxu0 0
        %658 = vmatprep.subr.bf16.mxu0 0
        %659 = vmatpush1.bf16.msra.mxu0 0
        %660 = vmatprep.subr.bf16.mxu0 0
        %661 = vmatpush1.bf16.msra.mxu0 0
        %662 = vmatprep.subr.bf16.mxu0 0
        %663 = vmatpush1.bf16.msra.mxu0 0
        %664 = vmatprep.subr.bf16.mxu0 0
        %665 = vmatpush1.bf16.msra.mxu0 0
        %666 = vmatprep.subr.bf16.mxu0 0
        %667 = vmatpush1.bf16.msra.mxu0 0
        %668 = vmatprep.subr.bf16.mxu0 0
        %669 = vmatpush1.bf16.msra.mxu0 0
        %670 = vmatprep.subr.bf16.mxu0 0
        %671 = vmatpush1.bf16.msra.mxu0 0
        %672 = vmatprep.subr.bf16.mxu0 0
        %673 = vmatpush1.bf16.msra.mxu0 0
        %674 = vmatprep.subr.bf16.mxu0 0
        %675 = vmatpush1.bf16.msra.mxu0 0
        %676 = vmatprep.subr.bf16.mxu0 0
        %677 = vmatpush1.bf16.msra.mxu0 0
        %678 = vmatprep.subr.bf16.mxu0 0
        %679 = vmatpush1.bf16.msra.mxu0 0
        %680 = vmatprep.mubr.bf16.mxu0 0
        %681 = vmatmul.mubr.bf16.gmra.mrb[0].mxu0 %v640
        %v682 = vpop.f32.mrb[0].mxu0
        %v683 = vadd.f32 %v189, %v682
        %v684 = vpop.f32.mrb[0].mxu0
        %v685 = vadd.f32 %v215, %v684
        %v686 = vpop.f32.mrb[0].mxu0
        %v687 = vpop.f32.mrb[0].mxu0
        %688 = vdwg.mxu0
        %v689 = vmax.f32 %v683, 0.0
        %v690 = vmax.f32 %v685, 0.0
        %v693 = vcombine.low %v689, %v690
        %695 = vst [vmem:[%s186] sm:$0xff] %v693
        %s696 = sand.u32 %s96, 1
        %s697 = scalar_lea.sflag [#allocation5], %s696
        %s698 = sand.u32 %s96, 1
        %s699 = smul.addr %s698, 8
        %s700 = scalar_lea.vmem [#allocation6], %s699
        // Predicated region
        $region37: #{tpu_custom_call.1} parent=31 // pred_check
          %p701 = pneg %p106
        $region38: #{tpu_custom_call.1} parent=31 // pred_check_branch
          %703 = sbr.rel (%p701) target = $region40
        $region39: #{tpu_custom_call.1} parent=31 // pred_region
          %s705 = ssub.s32 128, 128
          %706 = vsyncadd %s697, %s705
          %s707 = smul.addr %s20, 2
          %s708 = smul.addr %s707, 64
          %s709 = scalar_lea.hbm %s3, %s708
          %s711 = sshll.u32 %s700, 4
          %s712 = int_to_ptr.vmem [resolvable:$true] %s711
          %714 = dma.vmem_to_hbm [thread:$0]  %s712, 128, %s709, %s697
        $region40: #{tpu_custom_call.1} parent=31 // pred_fallthru
          _
      $region32: #{tpu_custom_call.1} parent=5 // pred_fallthru
        _
      %p715 = scmp.le.s32.totalorder 2, %s15
      // Predicated region
      $region41: #{tpu_custom_call.1} parent=5 // pred_check
        %p716 = pneg %p715
      $region42: #{tpu_custom_call.1} parent=5 // pred_check_branch
        %718 = sbr.rel (%p716) target = $region44
      $region43: #{tpu_custom_call.1} parent=5 // pred_region
        %s719 = ssub.s32 %s15, 2
        // Predicated region
        $region45: #{tpu_custom_call.1} parent=43 // pred_check
          %p720 = pneg %p112
        $region46: #{tpu_custom_call.1} parent=43 // pred_check_branch
          %722 = sbr.rel (%p720) target = $region48
        $region47: #{tpu_custom_call.1} parent=43 // pred_region
          %s723 = sand.u32 %s97, 1
          %s724 = scalar_lea.sflag [#allocation5], %s723
          %s725 = sand.u32 %s97, 1
          %s726 = smul.addr %s725, 8
          %s727 = scalar_lea.vmem [#allocation6], %s726
          %728 = dma.done %s724, 128
        $region48: #{tpu_custom_call.1} parent=43 // pred_fallthru
          _
      $region44: #{tpu_custom_call.1} parent=5 // pred_fallthru
        _
    $region6: #{tpu_custom_call.1} parent=1 // loop_footer
      %s19 = sadd.s32 1, %s15
    $region7: #{tpu_custom_call.1} parent=1 // loop_footer_branch
      %14 = sbr.rel target = $region3
    $region8: #{tpu_custom_call.1} parent=1 // loop_exit
      _
    %729 = vsyncpa [#allocation4], 1
    %s730 = scalar_lea.sflag [#allocation4], 1
    %731 = vsyncpa %s730, 1
    %732 = vsyncpa [#allocation5], 1
    %s733 = scalar_lea.sflag [#allocation5], 1
    %734 = vsyncpa %s733, 1

</llo_original>
